<compile_context>
chip_gen: v7x
topology: tpu7x:2x2x1
jax: 0.10.0
libtpu: 0.0.40
codegen_flags: <defaults>
</compile_context>

<pallas_src>
import functools

import jax
import jax.numpy as jnp
from jax import lax
from jax.experimental import pallas as pl
from jax.experimental.pallas import tpu as pltpu

_NEG_SLOPE = 0.01        # F.leaky_relu default negative_slope
_LANE_BLOCK = 8192       # max batch (lane-axis) tile; multiple of 128. Sweep 8K-32K.
_SPLIT_B = 256           # above this, force >=2 lane-aligned tiles (v7x megacore)
_JAX_FALLBACK_B = 1024   # below this, plain XLA fusion beats pallas_call fixed cost


def _net_kernel(x_ref, p_ref, o_ref, *, S, H, A, W):
    # x_ref: [block_b, S] f32      p_ref: [H+A, W] f32 (packed weights/biases)
    # o_ref: [A, block_b] f32  (lane-dense output: batch on the lane axis)
    p = p_ref[...]
    w1 = p[:H, :S].astype(jnp.bfloat16)            # [H, S]
    b1 = p[:H, W - 1:W]                            # [H, 1] f32
    w2 = p[H:H + A, :H].astype(jnp.bfloat16)       # [A, H]
    b2 = p[H:H + A, W - 1:W]                       # [A, 1] f32

    x = x_ref[...].astype(jnp.bfloat16)            # [block_b, S]

    # h[H, block_b] = w1 @ x^T : contract the S axis of both operands (MXU trans_b path),
    # so no wrapper-side transpose of x and no in-kernel weight transposes are needed.
    h = lax.dot_general(w1, x, dimension_numbers=(((1,), (1,)), ((), ())),
                        preferred_element_type=jnp.float32) + b1
    h = jnp.maximum(h, _NEG_SLOPE * h)             # leaky_relu (f32)

    logits = jnp.dot(w2, h.astype(jnp.bfloat16),
                     preferred_element_type=jnp.float32) + b2      # [A, block_b]
    logits = jnp.maximum(logits, _NEG_SLOPE * logits)

    # Numerically stable softmax over the action (sublane) axis, EXACT normalization.
    # Columns belonging to a partial trailing block hold garbage, but every op here is
    # column-independent and Pallas masks their stores, so they never reach HBM.
    m = jnp.max(logits, axis=0, keepdims=True)
    e = jnp.exp(logits - m)
    o_ref[...] = (e / jnp.sum(e, axis=0, keepdims=True)).astype(o_ref.dtype)


def _pack_params(w1, b1, w2, b2):
    H, S = w1.shape
    A, _ = w2.shape
    W = max(S, H) + 1
    p = jnp.zeros((H + A, W), jnp.float32)
    p = p.at[:H, :S].set(w1.astype(jnp.float32))
    p = p.at[:H, W - 1].set(b1.astype(jnp.float32))
    p = p.at[H:, :H].set(w2.astype(jnp.float32))
    p = p.at[H:, W - 1].set(b2.astype(jnp.float32))
    return p, S, H, A, W


def net_forward(x, w1, b1, w2, b2, *, force_pallas=False, transpose_output=True):
    """Forward pass of `Net`: x [B, S] -> softmax probs [B, A] (or [A, B] if
    transpose_output=False, the kernel-native lane-dense layout)."""
    B, S = x.shape
    H, S_w = w1.shape
    A, H_w = w2.shape
    assert S_w == S and H_w == H

    # Tiny-batch fast path: XLA fuses this 3-op MLP; pallas_call fixed cost dominates.
    if not force_pallas and B < _JAX_FALLBACK_B:
        probs = net_reference(x, w1, b1, w2, b2)
        return probs if transpose_output else probs.T

    if x.dtype != jnp.float32:
        x = x.astype(jnp.float32)
    params, S, H, A, W = _pack_params(w1, b1, w2, b2)

    # Batch tile selection (batch lives on the lane axis of the output).
    if B <= _SPLIT_B:
        block_b = B                                        # block == full dim: always legal
    else:
        # >=2 lane-aligned tiles so ("parallel",) shards across both v7x TensorCores;
        # cap at _LANE_BLOCK (per-step VMEM stays a few MiB, under every gen's default).
        block_b = min(_LANE_BLOCK, ((pl.cdiv(B, 2) + 127) // 128) * 128)
    num_tiles = pl.cdiv(B, block_b)

    cost = pl.CostEstimate(
        flops=2 * B * (S * H + H * A),
        transcendentals=B * A,
        bytes_accessed=4 * (B * S + B * A + (H + A) * W),
    )

    kernel = functools.partial(_net_kernel, S=S, H=H, A=A, W=W)

    oT = pl.pallas_call(
        kernel,
        out_shape=jax.ShapeDtypeStruct((A, B), jnp.float32),
        grid_spec=pltpu.PrefetchScalarGridSpec(
            num_scalar_prefetch=0,
            grid=(num_tiles,),
            in_specs=[
                pl.BlockSpec((block_b, S), lambda i: (i, 0)),   # x tiles (pipelined)
                pl.BlockSpec((H + A, W), lambda i: (0, 0)),     # packed params, VMEM-resident
            ],
            out_specs=pl.BlockSpec((A, block_b), lambda i: (0, i)),  # lane-dense output
        ),
        compiler_params=pltpu.CompilerParams(
            dimension_semantics=("parallel",),   # batch tiles shard across TCs on v7x
        ),
        cost_estimate=cost,
    )(x, params)

    return oT.T if transpose_output else oT


def net_reference(x, w1, b1, w2, b2):
    """Pure-JAX reference mirroring the PyTorch module."""
    h = x @ w1.T + b1
    h = jnp.where(h > 0, h, _NEG_SLOPE * h)
    logits = h @ w2.T + b2
    logits = jnp.where(logits > 0, logits, _NEG_SLOPE * logits)
    return jax.nn.softmax(logits, axis=-1)


def init_params(key, number_states, number_actions, hidden=10):
    k1, k2, k3, k4 = jax.random.split(key, 4)
    # xavier_normal_ for both weight matrices (std = sqrt(2 / (fan_in + fan_out)))
    std1 = (2.0 / (number_states + hidden)) ** 0.5
    std2 = (2.0 / (hidden + number_actions)) ** 0.5
    w1 = std1 * jax.random.normal(k1, (hidden, number_states), jnp.float32)
    w2 = std2 * jax.random.normal(k2, (number_actions, hidden), jnp.float32)
    # PyTorch Linear bias default: U(-1/sqrt(fan_in), 1/sqrt(fan_in))
    bnd1 = 1.0 / (number_states ** 0.5)
    bnd2 = 1.0 / (hidden ** 0.5)
    b1 = jax.random.uniform(k3, (hidden,), jnp.float32, -bnd1, bnd1)
    b2 = jax.random.uniform(k4, (number_actions,), jnp.float32, -bnd2, bnd2)
    return w1, b1, w2, b2


if __name__ == "__main__":
    number_states = 4    # e.g. CartPole observation dim
    number_actions = 2   # e.g. CartPole action dim

    key = jax.random.PRNGKey(0)
    kx1, kx2, kp = jax.random.split(key, 3)
    w1, b1, w2, b2 = init_params(kp, number_states, number_actions)

    # Small demo batch (single full-extent tile); force the Pallas path.
    x_small = jax.random.normal(kx1, (8, number_states), jnp.float32)
    probs = net_forward(x_small, w1, b1, w2, b2, force_pallas=True)
    jax.block_until_ready(probs)
    ref = net_reference(x_small, w1, b1, w2, b2)
    assert probs.shape == (8, number_actions)
    # bf16 matmul operands -> allow ~1e-2 deviation on probabilities
    assert jnp.allclose(probs, ref, atol=2e-2), float(jnp.max(jnp.abs(probs - ref)))
    # exact softmax normalization: rows sum to 1 (f32 rounding only)
    assert jnp.allclose(jnp.sum(probs, axis=-1), 1.0, atol=1e-4)

    # Larger batch: exercises >=2 lane-aligned tiles + a partial trailing block.
    x_big = jax.random.normal(kx2, (1000, number_states), jnp.float32)
    probs_big = net_forward(x_big, w1, b1, w2, b2, force_pallas=True)
    jax.block_until_ready(probs_big)
    ref_big = net_reference(x_big, w1, b1, w2, b2)
    assert probs_big.shape == (1000, number_actions)
    assert jnp.allclose(probs_big, ref_big, atol=2e-2), \
        float(jnp.max(jnp.abs(probs_big - ref_big)))
    assert jnp.allclose(jnp.sum(probs_big, axis=-1), 1.0, atol=1e-4)

    print("KERNEL_OK")
</pallas_src>

<mosaic_0001>
module attributes {stable_mosaic.version = 11 : i64} {
  func.func @_net_kernel(%arg0: i32, %arg1: memref<8x4xf32, #tpu.memory_space<vmem>>, %arg2: memref<12x11xf32, #tpu.memory_space<vmem>>, %arg3: memref<2x8xf32, #tpu.memory_space<vmem>>) attributes {dimension_semantics = [#tpu.dimension_semantics<parallel>], iteration_bounds = array<i64: 1>, scalar_prefetch = 0 : i64, scratch_operands = 0 : i64, tpu.core_type = #tpu.core_type<tc>, window_params = [{transform_indices = @transform_0, window_bounds = array<i64: 8, 4>}, {pipeline_mode = #tpu.pipeline_mode<synchronous>, transform_indices = @transform_1, window_bounds = array<i64: 12, 11>}, {transform_indices = @transform_2, window_bounds = array<i64: 2, 8>}]} {
    %c0 = arith.constant 0 : index
    %c0_0 = arith.constant 0 : index
    %0 = vector.load %arg2[%c0, %c0_0] : memref<12x11xf32, #tpu.memory_space<vmem>>, vector<12x11xf32>
    %1 = vector.extract_strided_slice %0 {offsets = [0, 0], sizes = [10, 4], strides = [1, 1]} : vector<12x11xf32> to vector<10x4xf32>
    %2 = arith.truncf %1 : vector<10x4xf32> to vector<10x4xbf16>
    %3 = vector.extract_strided_slice %0 {offsets = [0, 10], sizes = [10, 1], strides = [1, 1]} : vector<12x11xf32> to vector<10x1xf32>
    %4 = vector.extract_strided_slice %0 {offsets = [10, 0], sizes = [2, 10], strides = [1, 1]} : vector<12x11xf32> to vector<2x10xf32>
    %5 = arith.truncf %4 : vector<2x10xf32> to vector<2x10xbf16>
    %6 = vector.extract_strided_slice %0 {offsets = [10, 10], sizes = [2, 1], strides = [1, 1]} : vector<12x11xf32> to vector<2x1xf32>
    %c0_1 = arith.constant 0 : index
    %c0_2 = arith.constant 0 : index
    %7 = vector.load %arg1[%c0_1, %c0_2] : memref<8x4xf32, #tpu.memory_space<vmem>>, vector<8x4xf32>
    %8 = arith.truncf %7 : vector<8x4xf32> to vector<8x4xbf16>
    %cst = arith.constant dense<0.000000e+00> : vector<10x8xf32>
    %9 = tpu.matmul %2, %8, %cst {dimension_numbers = #tpu.dot_dimension_numbers<[1], [1], [0], [0], [0, 0, 1, 0], [], []>} : vector<10x4xbf16>, vector<8x4xbf16>, vector<10x8xf32> -> vector<10x8xf32>
    %10 = vector.broadcast %3 : vector<10x1xf32> to vector<10x8xf32>
    %11 = arith.addf %9, %10 : vector<10x8xf32>
    %cst_3 = arith.constant 0.00999999977 : f32
    %12 = vector.broadcast %cst_3 : f32 to vector<10x8xf32>
    %13 = arith.mulf %12, %11 : vector<10x8xf32>
    %14 = arith.maximumf %11, %13 : vector<10x8xf32>
    %15 = arith.truncf %14 : vector<10x8xf32> to vector<10x8xbf16>
    %cst_4 = arith.constant dense<0.000000e+00> : vector<2x8xf32>
    %16 = tpu.matmul %5, %15, %cst_4 {dimension_numbers = #tpu.dot_dimension_numbers<[1], [0], [0], [1], [0, 0, 1, 1], [], []>} : vector<2x10xbf16>, vector<10x8xbf16>, vector<2x8xf32> -> vector<2x8xf32>
    %17 = vector.broadcast %6 : vector<2x1xf32> to vector<2x8xf32>
    %18 = arith.addf %16, %17 : vector<2x8xf32>
    %cst_5 = arith.constant 0.00999999977 : f32
    %19 = vector.broadcast %cst_5 : f32 to vector<2x8xf32>
    %20 = arith.mulf %19, %18 : vector<2x8xf32>
    %21 = arith.maximumf %18, %20 : vector<2x8xf32>
    %cst_6 = arith.constant dense<0xFF800000> : vector<8xf32>
    %22 = vector.multi_reduction <maximumf>, %21, %cst_6 [0] : vector<2x8xf32> to vector<8xf32>
    %23 = vector.shape_cast %22 : vector<8xf32> to vector<1x8xf32>
    %24 = vector.broadcast %23 : vector<1x8xf32> to vector<2x8xf32>
    %25 = arith.subf %21, %24 : vector<2x8xf32>
    %26 = math.exp %25 : vector<2x8xf32>
    %cst_7 = arith.constant dense<0.000000e+00> : vector<8xf32>
    %27 = vector.multi_reduction <add>, %26, %cst_7 [0] : vector<2x8xf32> to vector<8xf32>
    %28 = vector.shape_cast %27 : vector<8xf32> to vector<1x8xf32>
    %29 = vector.broadcast %28 : vector<1x8xf32> to vector<2x8xf32>
    %30 = arith.divf %26, %29 : vector<2x8xf32>
    %c0_8 = arith.constant 0 : index
    %c0_9 = arith.constant 0 : index
    %31 = vector.load %arg3[%c0_8, %c0_9] : memref<2x8xf32, #tpu.memory_space<vmem>>, vector<2x8xf32>
    tpu.vector_store %arg3[%c0_8, %c0_9], %30 {strides = array<i32>} : memref<2x8xf32, #tpu.memory_space<vmem>>, vector<2x8xf32>,
    return
  }
  func.func @transform_0(%arg0: i32) -> (i32, i32) {
    %c0_i32 = arith.constant 0 : i32
    %c0_i32_0 = arith.constant 0 : i32
    return %arg0, %c0_i32 : i32, i32
  }
  func.func @transform_1(%arg0: i32) -> (i32, i32) {
    %c0_i32 = arith.constant 0 : i32
    %c0_i32_0 = arith.constant 0 : i32
    %c0_i32_1 = arith.constant 0 : i32
    return %c0_i32, %c0_i32_0 : i32, i32
  }
  func.func @transform_2(%arg0: i32) -> (i32, i32) {
    %c0_i32 = arith.constant 0 : i32
    %c0_i32_0 = arith.constant 0 : i32
    return %c0_i32, %arg0 : i32, i32
  }
}

</mosaic_0001>

<llo_original>
// kernel: tpu_custom_call.1
$region0: #{tpu_custom_call.1}
  #allocation0 [shape = 'u32[]', space=smem, size = 0x4, offset = 0x4, fixed_abs, tag = 'smem constant byte address 0x4 - core index']
  #allocation1 [shape = 'u32[144,128]{1,0:T(1,128)}', space=vmem, size = 0x12000, scoped, tag = 'internal scratch']
  %s0 = inlined_call_operand.vmem [shape: f32[8,4], index: 0, kind: input, shape index: {}]
  %s1 = inlined_call_operand.hbm [shape: f32[12,11], index: 1, kind: input, shape index: {}]
  %s2 = inlined_call_operand.hbm [shape: f32[2,8], index: 2, kind: output, shape index: {}]
  %s3 = sld [smem:[#allocation0]]
  $region22: #{tpu_custom_call.1} parent=0
    _
  %s5 = ssub.s32 1, %s3
  %s6 = scalar_select 0, %s5, %s3
  $region1: #{tpu_custom_call.1} parent=0
    #allocation2 [shape = 'u8[8192]{0}', space=vmem, size = 0x2000, scoped, tag = 'input window, operand 1, single buffered']
    #allocation3 [shape = 's32[1]{0}', space=sflag, size = 0x4, scoped, tag = 'scoped memory for tpu_custom_call.1']
    #allocation4 [shape = 's32[1]{0}', space=sflag, size = 0x4, scoped, tag = 'scoped memory for tpu_custom_call.1']
    #allocation5 [shape = 'u8[1024]{0}', space=vmem, size = 0x400, scoped, tag = 'output window, operand 0, single buffered']
    %7 = vsyncpa [#allocation3], 0
    %8 = vsyncpa [#allocation4], 0
    // Predicated region
    $region2: #{tpu_custom_call.1} parent=1 // pred_check
      _
    $region3: #{tpu_custom_call.1} parent=1 // pred_check_branch
      %10 = sbr.rel (0) target = $region5
    $region4: #{tpu_custom_call.1} parent=1 // pred_region
      _
    $region5: #{tpu_custom_call.1} parent=1 // pred_fallthru
      _
    // Predicated region
    $region6: #{tpu_custom_call.1} parent=1 // pred_check
      _
    $region7: #{tpu_custom_call.1} parent=1 // pred_check_branch
      %12 = sbr.rel (0) target = $region9
    $region8: #{tpu_custom_call.1} parent=1 // pred_region
      %s14 = ssub.s32 256, 256
      %15 = vsyncadd [#allocation3], %s14
      %s16 = sshll.u32 [#allocation2], 4
      %s17 = int_to_ptr.vmem [resolvable:$true] %s16
      %22 = dma.hbm_to_vmem [thread:$0]  %s1, 256, %s17, [#allocation3], 128, 128, 8
    $region9: #{tpu_custom_call.1} parent=1 // pred_fallthru
      _
    // Predicated region
    $region10: #{tpu_custom_call.1} parent=1 // pred_check
      _
    $region11: #{tpu_custom_call.1} parent=1 // pred_check_branch
      %24 = sbr.rel (0) target = $region13
    $region12: #{tpu_custom_call.1} parent=1 // pred_region
      %25 = dma.done [#allocation3], 256
    $region13: #{tpu_custom_call.1} parent=1 // pred_fallthru
      _
    %v27 = vld [vmem:[#allocation2] sm:$0xff]
    %v28 = vld [vmem:[#allocation2 + $0x8] sm:$0xf]
    %v29 = vpack.c.bf16 %v28, %v27
    %v30 = vpack.c.bf16 %v28, %v28
    %v31 = vld [vmem:[%s0] sm:$0xff]
    %v32 = vpack.c.bf16 %v31, %v31
    %34 = vset.pattern.permute.xlu0 10
    %35 = vperm.xlu0 %34, %v27
    %v36 = vpop.permute.xlu0 %35
    %39 = vset.pattern.permute.xlu0 10
    %40 = vperm.xlu0 %39, %v28
    %v41 = vpop.permute.xlu0 %40
    %vm43 = vcmask 31744
    %v45 = vsel %vm43, %v29, 0
    %v48 = vsel %vm43, %v32, 0
    %50 = vmatprep.subr.bf16.mxu0 0
    %51 = vmatpush1.bf16.xpose.msra.mxu0 %v48
    %52 = vmatprep.subr.bf16.mxu0 0
    %53 = vmatpush1.bf16.xpose.msra.mxu0 0
    %54 = vmatprep.subr.bf16.mxu0 0
    %55 = vmatpush1.bf16.xpose.msra.mxu0 0
    %56 = vmatprep.subr.bf16.mxu0 0
    %57 = vmatpush1.bf16.xpose.msra.mxu0 0
    %58 = vmatprep.subr.bf16.mxu0 0
    %59 = vmatpush1.bf16.xpose.msra.mxu0 0
    %60 = vmatprep.subr.bf16.mxu0 0
    %61 = vmatpush1.bf16.xpose.msra.mxu0 0
    %62 = vmatprep.subr.bf16.mxu0 0
    %63 = vmatpush1.bf16.xpose.msra.mxu0 0
    %64 = vmatprep.subr.bf16.mxu0 0
    %65 = vmatpush1.bf16.xpose.msra.mxu0 0
    %66 = vmatprep.subr.bf16.mxu0 0
    %67 = vmatpush1.bf16.xpose.msra.mxu0 0
    %68 = vmatprep.subr.bf16.mxu0 0
    %69 = vmatpush1.bf16.xpose.msra.mxu0 0
    %70 = vmatprep.subr.bf16.mxu0 0
    %71 = vmatpush1.bf16.xpose.msra.mxu0 0
    %72 = vmatprep.subr.bf16.mxu0 0
    %73 = vmatpush1.bf16.xpose.msra.mxu0 0
    %74 = vmatprep.subr.bf16.mxu0 0
    %75 = vmatpush1.bf16.xpose.msra.mxu0 0
    %76 = vmatprep.subr.bf16.mxu0 0
    %77 = vmatpush1.bf16.xpose.msra.mxu0 0
    %78 = vmatprep.subr.bf16.mxu0 0
    %79 = vmatpush1.bf16.xpose.msra.mxu0 0
    %80 = vmatprep.subr.bf16.mxu0 0
    %81 = vmatpush1.bf16.xpose.msra.mxu0 0
    %82 = vmatprep.mubr.bf16.mxu0 0
    %83 = vmatmul.mubr.bf16.gmra.mrb[0].mxu0 %v45
    %v84 = vpop.f32.mrb[0].mxu0
    %v85 = vadd.f32 %v36, %v84
    %v86 = vpop.f32.mrb[0].mxu0
    %v87 = vpop.f32.mrb[0].mxu0
    %v88 = vadd.f32 %v41, %v87
    %v89 = vpop.f32.mrb[0].mxu0
    %90 = vdwg.mxu0
    %v91 = vmul.f32 %v85, 0.01
    %v92 = vmul.f32 %v88, 0.01
    %v93 = vmax.f32 %v85, %v91
    %v94 = vmax.f32 %v88, %v92
    %v95 = vpack.c.bf16 %v94, %v93
    %v97 = vrot.slane %v30, 1
    %v98 = vrot.slane %v41, 2
    %vm100 = vcmask 80896
    %v102 = vsel %vm100, %v97, 0
    %vm104 = vcmask 1044480
    %v106 = vsel %vm104, %v95, 0
    %108 = vmatprep.subr.bf16.mxu0 0
    %109 = vmatpush1.bf16.msra.mxu0 %v106
    %110 = vmatprep.subr.bf16.mxu0 0
    %111 = vmatpush1.bf16.msra.mxu0 0
    %112 = vmatprep.subr.bf16.mxu0 0
    %113 = vmatpush1.bf16.msra.mxu0 0
    %114 = vmatprep.subr.bf16.mxu0 0
    %115 = vmatpush1.bf16.msra.mxu0 0
    %116 = vmatprep.subr.bf16.mxu0 0
    %117 = vmatpush1.bf16.msra.mxu0 0
    %118 = vmatprep.subr.bf16.mxu0 0
    %119 = vmatpush1.bf16.msra.mxu0 0
    %120 = vmatprep.subr.bf16.mxu0 0
    %121 = vmatpush1.bf16.msra.mxu0 0
    %122 = vmatprep.subr.bf16.mxu0 0
    %123 = vmatpush1.bf16.msra.mxu0 0
    %124 = vmatprep.subr.bf16.mxu0 0
    %125 = vmatpush1.bf16.msra.mxu0 0
    %126 = vmatprep.subr.bf16.mxu0 0
    %127 = vmatpush1.bf16.msra.mxu0 0
    %128 = vmatprep.subr.bf16.mxu0 0
    %129 = vmatpush1.bf16.msra.mxu0 0
    %130 = vmatprep.subr.bf16.mxu0 0
    %131 = vmatpush1.bf16.msra.mxu0 0
    %132 = vmatprep.subr.bf16.mxu0 0
    %133 = vmatpush1.bf16.msra.mxu0 0
    %134 = vmatprep.subr.bf16.mxu0 0
    %135 = vmatpush1.bf16.msra.mxu0 0
    %136 = vmatprep.subr.bf16.mxu0 0
    %137 = vmatpush1.bf16.msra.mxu0 0
    %138 = vmatprep.subr.bf16.mxu0 0
    %139 = vmatpush1.bf16.msra.mxu0 0
    %140 = vmatprep.mubr.bf16.mxu0 0
    %141 = vmatmul.mubr.bf16.gmra.mrb[0].mxu0 %v102
    %v142 = vpop.f32.mrb[0].mxu0
    %v143 = vadd.f32 %v98, %v142
    %v144 = vpop.f32.mrb[0].mxu0
    %v145 = vpop.f32.mrb[0].mxu0
    %v146 = vpop.f32.mrb[0].mxu0
    %147 = vdwg.mxu0
    %v148 = vmul.f32 %v143, 0.01
    %v149 = vmax.f32 %v143, %v148
    %vm150 = vcmask 58368
    %v151 = vsel %vm150, %v149, -inf
    %v152 = vrot.slane %v151, 4
    %v153 = vmax.f32 %v151, %v152
    %v154 = vrot.slane %v153, 2
    %v155 = vmax.f32 %v153, %v154
    %v156 = vrot.slane %v155, 1
    %v157 = vmax.f32 %v155, %v156
    %v158 = vsub.f32 %v149, %v157
    %v159 = vmul.f32 %v158, 1.442695
    %v160 = vpow.pop %v159
    %v161 = vsel %vm150, %v160, 0.0
    %v162 = vrot.slane %v161, 4
    %v163 = vadd.f32 %v161, %v162
    %v164 = vrot.slane %v163, 2
    %v165 = vadd.f32 %v163, %v164
    %v166 = vrot.slane %v165, 1
    %v167 = vadd.f32 %v165, %v166
    %v168 = vrcp.pop %v167
    %v169 = vmul.f32 %v160, %v168
    %170 = vst.msk [vmem:[#allocation5] sm:$0x3] %vm150, %v169
    // Predicated region
    $region14: #{tpu_custom_call.1} parent=1 // pred_check
      _
    $region15: #{tpu_custom_call.1} parent=1 // pred_check_branch
      %172 = sbr.rel (0) target = $region17
    $region16: #{tpu_custom_call.1} parent=1 // pred_region
      %s174 = ssub.s32 32, 32
      %175 = vsyncadd [#allocation4], %s174
      %s177 = sshll.u32 [#allocation5], 4
      %s178 = int_to_ptr.vmem [resolvable:$true] %s177
      %180 = dma.vmem_to_hbm [thread:$0]  %s178, 32, %s2, [#allocation4]
    $region17: #{tpu_custom_call.1} parent=1 // pred_fallthru
      _
    // Predicated region
    $region18: #{tpu_custom_call.1} parent=1 // pred_check
      _
    $region19: #{tpu_custom_call.1} parent=1 // pred_check_branch
      %182 = sbr.rel (0) target = $region21
    $region20: #{tpu_custom_call.1} parent=1 // pred_region
      %183 = dma.done [#allocation4], 32
    $region21: #{tpu_custom_call.1} parent=1 // pred_fallthru
      _
    %184 = vsyncpa [#allocation3], 1
    %185 = vsyncpa [#allocation4], 1

</llo_original>
